<compile_context>
chip_gen: v6e
topology: v6e:2x2x1
jax: 0.10.0
libtpu: 0.0.40
codegen_flags: <defaults>
</compile_context>

<pallas_src>
import jax
import jax.numpy as jnp
from jax.experimental import pallas as pl
from jax.experimental.pallas import tpu as pltpu

_SUBLANES = 8    # f32 sublane tile
_LANES = 128     # lane tile


def _lstm_kernel(x_ref, wg_ref, bg_ref, wfc_ref, bfc_ref, out_ref):
    # x_ref  : (T*Bp, I)   time-major rows (row = t*Bp + b), batch zero-padded
    #                      to Bp=8 so each timestep is one full sublane tile.
    # wg_ref : (I, 4H)     fused [i|f|g|o] gate weights
    # bg_ref : (1, 4H)     fused gate biases
    # wfc_ref: (H, Op)     fc weight zero-padded to Op=128 lanes
    # bfc_ref: (1, Op)     fc bias  zero-padded to Op=128 lanes
    # out_ref: (Bp, Op)    lane-dense output tile
    TBp, _ = x_ref.shape
    H = wfc_ref.shape[0]
    Bp = out_ref.shape[0]
    T = TBp // Bp

    # One MXU pass for all gates at all timesteps (M = T*Bp, N = 4H = 128
    # lanes -> full lane utilisation).
    pre = jnp.dot(x_ref[...], wg_ref[...], preferred_element_type=jnp.float32)
    pre = pre + bg_ref[...]                                    # (T*Bp, 4H)

    # Batched activations over the whole sequence (VPU/EUP, no per-step work).
    i_all = jax.nn.sigmoid(pre[:, 0 * H:1 * H])                # (T*Bp, H)
    f_all = jax.nn.sigmoid(pre[:, 1 * H:2 * H])                # (T*Bp, H)
    g_all = jnp.tanh(pre[:, 2 * H:3 * H])                      # (T*Bp, H)
    ig_all = i_all * g_all                                     # (T*Bp, H)

    # Serial part: purely elementwise recurrence on c.  Each slice starts at a
    # multiple of 8 sublanes -> tile-aligned, one FMA-style VPU op per step.
    c = jnp.zeros((Bp, H), jnp.float32)
    for t in range(T):
        lo = t * Bp
        c = f_all[lo:lo + Bp, :] * c + ig_all[lo:lo + Bp, :]

    # Only the final hidden state is consumed by the fc head.
    o_last = jax.nn.sigmoid(pre[(T - 1) * Bp:, 3 * H:4 * H])   # (Bp, H)
    h = o_last * jnp.tanh(c)                                   # (Bp, H)

    # (Bp, H) @ (H, Op=128): lane-dense result -> single unmasked vreg store.
    out = jnp.dot(h, wfc_ref[...], preferred_element_type=jnp.float32)
    out_ref[...] = (out + bfc_ref[...]).astype(out_ref.dtype)


def lstm_network_forward(x, params):
    """x: (B, T, I) float32. Returns (B, O) float32."""
    B, T, I = x.shape
    H, O = params["w_fc"].shape

    Bp = max(_SUBLANES, ((B + _SUBLANES - 1) // _SUBLANES) * _SUBLANES)
    Op = max(_LANES, ((O + _LANES - 1) // _LANES) * _LANES)

    # Fuse the four gate Linears into one (I, 4H) weight / (1, 4H) bias so the
    # kernel issues a single MXU matmul for all gates & timesteps.  Weights are
    # stored (in, out): y = x @ W + b  ==  nn.Linear's x @ W.T + b.
    w_gates = jnp.concatenate(
        [params["w_i"], params["w_f"], params["w_g"], params["w_o"]], axis=1)
    b_gates = jnp.concatenate(
        [params["b_i"], params["b_f"], params["b_g"], params["b_o"]], axis=1)

    # Time-major rows with batch zero-padded to a full sublane tile (row =
    # t*Bp + b): every timestep is a contiguous, (8,·)-aligned slice inside
    # the kernel.  This is a tiny one-time XLA relayout at these shapes.
    # TODO(synk): for long T / large I, grid over time blocks (c in a VMEM
    # scratch) instead of materialising the whole relayouted sequence.
    x_tm = jnp.transpose(x, (1, 0, 2))                          # (T, B, I)
    if Bp != B:
        x_tm = jnp.pad(x_tm, ((0, 0), (0, Bp - B), (0, 0)))
    x_tm = x_tm.reshape(T * Bp, I)

    # Zero-pad the fc head to 128 output lanes so the kernel's output tile is
    # lane-dense; slice the real (B, O) block out afterwards.
    w_fc = jnp.pad(params["w_fc"], ((0, 0), (0, Op - O)))
    b_fc = jnp.pad(params["b_fc"], ((0, 0), (0, Op - O)))

    full = lambda shape: pl.BlockSpec(shape, lambda i: (0,) * len(shape))

    grid_spec = pltpu.PrefetchScalarGridSpec(
        num_scalar_prefetch=0,
        grid=(1,),  # whole problem fits in VMEM: no per-timestep grid steps/DMAs
        in_specs=[
            full((T * Bp, I)),                     # x, time-major, batch-padded
            full((I, 4 * H)), full((1, 4 * H)),    # fused gate weight / bias
            full((H, Op)), full((1, Op)),          # lane-padded fc weight / bias
        ],
        out_specs=pl.BlockSpec((Bp, Op), lambda i: (0, 0)),
    )

    cost = pl.CostEstimate(
        flops=2 * T * Bp * I * 4 * H + 2 * Bp * H * Op,
        transcendentals=3 * T * Bp * H + 2 * Bp * H,
        bytes_accessed=4 * (T * Bp * I + I * 4 * H + 4 * H
                            + H * Op + Op + Bp * Op),
    )

    out = pl.pallas_call(
        _lstm_kernel,
        out_shape=jax.ShapeDtypeStruct((Bp, Op), jnp.float32),
        grid_spec=grid_spec,
        cost_estimate=cost,
        compiler_params=pltpu.CompilerParams(
            dimension_semantics=("arbitrary",),
            vmem_limit_bytes=32 * 1024 * 1024,     # explicit (v7x-safe) budget
        ),
    )(x_tm, w_gates, b_gates, w_fc, b_fc)

    return out[:B, :O]


def init_params(key, input_size, hidden_size, output_size):
    ks = jax.random.split(key, 10)
    scale_in = 1.0 / jnp.sqrt(input_size)
    scale_h = 1.0 / jnp.sqrt(hidden_size)
    return {
        "w_i": jax.random.uniform(ks[0], (input_size, hidden_size), jnp.float32,
                                  -scale_in, scale_in),
        "w_f": jax.random.uniform(ks[1], (input_size, hidden_size), jnp.float32,
                                  -scale_in, scale_in),
        "w_g": jax.random.uniform(ks[2], (input_size, hidden_size), jnp.float32,
                                  -scale_in, scale_in),
        "w_o": jax.random.uniform(ks[3], (input_size, hidden_size), jnp.float32,
                                  -scale_in, scale_in),
        "b_i": jax.random.uniform(ks[4], (1, hidden_size), jnp.float32,
                                  -scale_in, scale_in),
        "b_f": jax.random.uniform(ks[5], (1, hidden_size), jnp.float32,
                                  -scale_in, scale_in),
        "b_g": jax.random.uniform(ks[6], (1, hidden_size), jnp.float32,
                                  -scale_in, scale_in),
        "b_o": jax.random.uniform(ks[7], (1, hidden_size), jnp.float32,
                                  -scale_in, scale_in),
        "w_fc": jax.random.uniform(ks[8], (hidden_size, output_size), jnp.float32,
                                   -scale_h, scale_h),
        "b_fc": jax.random.uniform(ks[9], (1, output_size), jnp.float32,
                                   -scale_h, scale_h),
    }


def reference_forward(x, params):
    """Pure-JAX reference matching the PyTorch module's forward."""
    B, T, I = x.shape
    H = params["w_i"].shape[1]
    h = jnp.zeros((B, H), jnp.float32)
    c = jnp.zeros((B, H), jnp.float32)
    for t in range(T):
        xt = x[:, t, :]
        i = jax.nn.sigmoid(xt @ params["w_i"] + params["b_i"])
        f = jax.nn.sigmoid(xt @ params["w_f"] + params["b_f"])
        g = jnp.tanh(xt @ params["w_g"] + params["b_g"])
        o = jax.nn.sigmoid(xt @ params["w_o"] + params["b_o"])
        c = f * c + i * g
        h = o * jnp.tanh(c)
    return h @ params["w_fc"] + params["b_fc"]


if __name__ == "__main__":
    batch, seq, input_size, hidden_size, output_size = 2, 8, 16, 32, 8

    key = jax.random.PRNGKey(0)
    kx, kp = jax.random.split(key)
    x = jax.random.normal(kx, (batch, seq, input_size), jnp.float32)
    params = init_params(kp, input_size, hidden_size, output_size)

    out = lstm_network_forward(x, params)
    out = jax.block_until_ready(out)

    ref = reference_forward(x, params)
    assert out.shape == (batch, output_size)
    assert jnp.allclose(out, ref, atol=1e-5, rtol=1e-5), "mismatch vs reference"

    print("KERNEL_OK")
</pallas_src>

<mosaic_0001>
module attributes {stable_mosaic.version = 11 : i64} {
  func.func @_lstm_kernel(%arg0: i32, %arg1: memref<64x16xf32, #tpu.memory_space<vmem>>, %arg2: memref<16x128xf32, #tpu.memory_space<vmem>>, %arg3: memref<1x128xf32, #tpu.memory_space<vmem>>, %arg4: memref<32x128xf32, #tpu.memory_space<vmem>>, %arg5: memref<1x128xf32, #tpu.memory_space<vmem>>, %arg6: memref<8x128xf32, #tpu.memory_space<vmem>>) attributes {dimension_semantics = [#tpu.dimension_semantics<arbitrary>], iteration_bounds = array<i64: 1>, scalar_prefetch = 0 : i64, scratch_operands = 0 : i64, tpu.core_type = #tpu.core_type<tc>, window_params = [{pipeline_mode = #tpu.pipeline_mode<synchronous>, transform_indices = @transform_0, window_bounds = array<i64: 64, 16>}, {pipeline_mode = #tpu.pipeline_mode<synchronous>, transform_indices = @transform_1, window_bounds = array<i64: 16, 128>}, {pipeline_mode = #tpu.pipeline_mode<synchronous>, transform_indices = @transform_2, window_bounds = array<i64: 1, 128>}, {pipeline_mode = #tpu.pipeline_mode<synchronous>, transform_indices = @transform_3, window_bounds = array<i64: 32, 128>}, {pipeline_mode = #tpu.pipeline_mode<synchronous>, transform_indices = @transform_4, window_bounds = array<i64: 1, 128>}, {pipeline_mode = #tpu.pipeline_mode<synchronous>, transform_indices = @transform_5, window_bounds = array<i64: 8, 128>}]} {
    %c0 = arith.constant 0 : index
    %c0_0 = arith.constant 0 : index
    %0 = vector.load %arg1[%c0, %c0_0] : memref<64x16xf32, #tpu.memory_space<vmem>>, vector<64x16xf32>
    %c0_1 = arith.constant 0 : index
    %c0_2 = arith.constant 0 : index
    %1 = vector.load %arg2[%c0_1, %c0_2] : memref<16x128xf32, #tpu.memory_space<vmem>>, vector<16x128xf32>
    %cst = arith.constant dense<0.000000e+00> : vector<64x128xf32>
    %2 = tpu.matmul %0, %1, %cst {dimension_numbers = #tpu.dot_dimension_numbers<[1], [0], [0], [1], [0, 0, 1, 1], [], []>} : vector<64x16xf32>, vector<16x128xf32>, vector<64x128xf32> -> vector<64x128xf32>
    %c0_3 = arith.constant 0 : index
    %c0_4 = arith.constant 0 : index
    %3 = vector.load %arg3[%c0_3, %c0_4] : memref<1x128xf32, #tpu.memory_space<vmem>>, vector<1x128xf32>
    %4 = vector.broadcast %3 : vector<1x128xf32> to vector<64x128xf32>
    %5 = arith.addf %2, %4 : vector<64x128xf32>
    %6 = vector.extract_strided_slice %5 {offsets = [0, 0], sizes = [64, 32], strides = [1, 1]} : vector<64x128xf32> to vector<64x32xf32>
    %7 = arith.negf %6 : vector<64x32xf32>
    %8 = math.exp %7 : vector<64x32xf32>
    %cst_5 = arith.constant 1.000000e+00 : f32
    %9 = vector.broadcast %cst_5 : f32 to vector<64x32xf32>
    %10 = arith.addf %9, %8 : vector<64x32xf32>
    %11 = arith.divf %9, %10 : vector<64x32xf32>
    %12 = vector.extract_strided_slice %5 {offsets = [0, 32], sizes = [64, 32], strides = [1, 1]} : vector<64x128xf32> to vector<64x32xf32>
    %13 = arith.negf %12 : vector<64x32xf32>
    %14 = math.exp %13 : vector<64x32xf32>
    %cst_6 = arith.constant 1.000000e+00 : f32
    %15 = vector.broadcast %cst_6 : f32 to vector<64x32xf32>
    %16 = arith.addf %15, %14 : vector<64x32xf32>
    %17 = arith.divf %15, %16 : vector<64x32xf32>
    %18 = vector.extract_strided_slice %5 {offsets = [0, 64], sizes = [64, 32], strides = [1, 1]} : vector<64x128xf32> to vector<64x32xf32>
    %19 = math.tanh %18 : vector<64x32xf32>
    %20 = arith.mulf %11, %19 : vector<64x32xf32>
    %cst_7 = arith.constant 0.000000e+00 : f32
    %21 = vector.broadcast %cst_7 : f32 to vector<8x32xf32>
    %22 = vector.extract_strided_slice %17 {offsets = [0, 0], sizes = [8, 32], strides = [1, 1]} : vector<64x32xf32> to vector<8x32xf32>
    %23 = arith.mulf %22, %21 : vector<8x32xf32>
    %24 = vector.extract_strided_slice %20 {offsets = [0, 0], sizes = [8, 32], strides = [1, 1]} : vector<64x32xf32> to vector<8x32xf32>
    %25 = arith.addf %23, %24 : vector<8x32xf32>
    %26 = vector.extract_strided_slice %17 {offsets = [8, 0], sizes = [8, 32], strides = [1, 1]} : vector<64x32xf32> to vector<8x32xf32>
    %27 = arith.mulf %26, %25 : vector<8x32xf32>
    %28 = vector.extract_strided_slice %20 {offsets = [8, 0], sizes = [8, 32], strides = [1, 1]} : vector<64x32xf32> to vector<8x32xf32>
    %29 = arith.addf %27, %28 : vector<8x32xf32>
    %30 = vector.extract_strided_slice %17 {offsets = [16, 0], sizes = [8, 32], strides = [1, 1]} : vector<64x32xf32> to vector<8x32xf32>
    %31 = arith.mulf %30, %29 : vector<8x32xf32>
    %32 = vector.extract_strided_slice %20 {offsets = [16, 0], sizes = [8, 32], strides = [1, 1]} : vector<64x32xf32> to vector<8x32xf32>
    %33 = arith.addf %31, %32 : vector<8x32xf32>
    %34 = vector.extract_strided_slice %17 {offsets = [24, 0], sizes = [8, 32], strides = [1, 1]} : vector<64x32xf32> to vector<8x32xf32>
    %35 = arith.mulf %34, %33 : vector<8x32xf32>
    %36 = vector.extract_strided_slice %20 {offsets = [24, 0], sizes = [8, 32], strides = [1, 1]} : vector<64x32xf32> to vector<8x32xf32>
    %37 = arith.addf %35, %36 : vector<8x32xf32>
    %38 = vector.extract_strided_slice %17 {offsets = [32, 0], sizes = [8, 32], strides = [1, 1]} : vector<64x32xf32> to vector<8x32xf32>
    %39 = arith.mulf %38, %37 : vector<8x32xf32>
    %40 = vector.extract_strided_slice %20 {offsets = [32, 0], sizes = [8, 32], strides = [1, 1]} : vector<64x32xf32> to vector<8x32xf32>
    %41 = arith.addf %39, %40 : vector<8x32xf32>
    %42 = vector.extract_strided_slice %17 {offsets = [40, 0], sizes = [8, 32], strides = [1, 1]} : vector<64x32xf32> to vector<8x32xf32>
    %43 = arith.mulf %42, %41 : vector<8x32xf32>
    %44 = vector.extract_strided_slice %20 {offsets = [40, 0], sizes = [8, 32], strides = [1, 1]} : vector<64x32xf32> to vector<8x32xf32>
    %45 = arith.addf %43, %44 : vector<8x32xf32>
    %46 = vector.extract_strided_slice %17 {offsets = [48, 0], sizes = [8, 32], strides = [1, 1]} : vector<64x32xf32> to vector<8x32xf32>
    %47 = arith.mulf %46, %45 : vector<8x32xf32>
    %48 = vector.extract_strided_slice %20 {offsets = [48, 0], sizes = [8, 32], strides = [1, 1]} : vector<64x32xf32> to vector<8x32xf32>
    %49 = arith.addf %47, %48 : vector<8x32xf32>
    %50 = vector.extract_strided_slice %17 {offsets = [56, 0], sizes = [8, 32], strides = [1, 1]} : vector<64x32xf32> to vector<8x32xf32>
    %51 = arith.mulf %50, %49 : vector<8x32xf32>
    %52 = vector.extract_strided_slice %20 {offsets = [56, 0], sizes = [8, 32], strides = [1, 1]} : vector<64x32xf32> to vector<8x32xf32>
    %53 = arith.addf %51, %52 : vector<8x32xf32>
    %54 = vector.extract_strided_slice %5 {offsets = [56, 96], sizes = [8, 32], strides = [1, 1]} : vector<64x128xf32> to vector<8x32xf32>
    %55 = arith.negf %54 : vector<8x32xf32>
    %56 = math.exp %55 : vector<8x32xf32>
    %cst_8 = arith.constant 1.000000e+00 : f32
    %57 = vector.broadcast %cst_8 : f32 to vector<8x32xf32>
    %58 = arith.addf %57, %56 : vector<8x32xf32>
    %59 = arith.divf %57, %58 : vector<8x32xf32>
    %60 = math.tanh %53 : vector<8x32xf32>
    %61 = arith.mulf %59, %60 : vector<8x32xf32>
    %c0_9 = arith.constant 0 : index
    %c0_10 = arith.constant 0 : index
    %62 = vector.load %arg4[%c0_9, %c0_10] : memref<32x128xf32, #tpu.memory_space<vmem>>, vector<32x128xf32>
    %cst_11 = arith.constant dense<0.000000e+00> : vector<8x128xf32>
    %63 = tpu.matmul %61, %62, %cst_11 {dimension_numbers = #tpu.dot_dimension_numbers<[1], [0], [0], [1], [0, 0, 1, 1], [], []>} : vector<8x32xf32>, vector<32x128xf32>, vector<8x128xf32> -> vector<8x128xf32>
    %c0_12 = arith.constant 0 : index
    %c0_13 = arith.constant 0 : index
    %64 = vector.load %arg5[%c0_12, %c0_13] : memref<1x128xf32, #tpu.memory_space<vmem>>, vector<1x128xf32>
    %65 = vector.broadcast %64 : vector<1x128xf32> to vector<8x128xf32>
    %66 = arith.addf %63, %65 : vector<8x128xf32>
    %c0_14 = arith.constant 0 : index
    %c0_15 = arith.constant 0 : index
    %67 = vector.load %arg6[%c0_14, %c0_15] : memref<8x128xf32, #tpu.memory_space<vmem>>, vector<8x128xf32>
    tpu.vector_store %arg6[%c0_14, %c0_15], %66 {strides = array<i32>} : memref<8x128xf32, #tpu.memory_space<vmem>>, vector<8x128xf32>,
    return
  }
  func.func @transform_0(%arg0: i32) -> (i32, i32) {
    %c0_i32 = arith.constant 0 : i32
    %c0_i32_0 = arith.constant 0 : i32
    %c0_i32_1 = arith.constant 0 : i32
    return %c0_i32, %c0_i32_0 : i32, i32
  }
  func.func @transform_1(%arg0: i32) -> (i32, i32) {
    %c0_i32 = arith.constant 0 : i32
    %c0_i32_0 = arith.constant 0 : i32
    %c0_i32_1 = arith.constant 0 : i32
    return %c0_i32, %c0_i32_0 : i32, i32
  }
  func.func @transform_2(%arg0: i32) -> (i32, i32) {
    %c0_i32 = arith.constant 0 : i32
    %c0_i32_0 = arith.constant 0 : i32
    %c0_i32_1 = arith.constant 0 : i32
    return %c0_i32, %c0_i32_0 : i32, i32
  }
  func.func @transform_3(%arg0: i32) -> (i32, i32) {
    %c0_i32 = arith.constant 0 : i32
    %c0_i32_0 = arith.constant 0 : i32
    %c0_i32_1 = arith.constant 0 : i32
    return %c0_i32, %c0_i32_0 : i32, i32
  }
  func.func @transform_4(%arg0: i32) -> (i32, i32) {
    %c0_i32 = arith.constant 0 : i32
    %c0_i32_0 = arith.constant 0 : i32
    %c0_i32_1 = arith.constant 0 : i32
    return %c0_i32, %c0_i32_0 : i32, i32
  }
  func.func @transform_5(%arg0: i32) -> (i32, i32) {
    %c0_i32 = arith.constant 0 : i32
    %c0_i32_0 = arith.constant 0 : i32
    %c0_i32_1 = arith.constant 0 : i32
    return %c0_i32, %c0_i32_0 : i32, i32
  }
}

</mosaic_0001>

<llo_original>
// kernel: tpu_custom_call.1
$region0: #{tpu_custom_call.1}
  #allocation0 [shape = 'u32[]', space=smem, size = 0x4, offset = 0x4, fixed_abs, tag = 'smem constant byte address 0x4 - core index']
  #allocation1 [shape = 'u32[144,128]{1,0:T(1,128)}', space=vmem, size = 0x12000, scoped, tag = 'internal scratch']
  %s0 = inlined_call_operand.vmem [shape: f32[64,16], index: 0, kind: input, shape index: {}]
  %s1 = inlined_call_operand.vmem [shape: f32[16,128], index: 1, kind: input, shape index: {}]
  %s2 = inlined_call_operand.vmem [shape: f32[1,128], index: 2, kind: input, shape index: {}]
  %s3 = inlined_call_operand.vmem [shape: f32[32,128], index: 3, kind: input, shape index: {}]
  %s4 = inlined_call_operand.vmem [shape: f32[1,128], index: 4, kind: input, shape index: {}]
  %s5 = inlined_call_operand.hbm [shape: f32[8,128], index: 5, kind: output, shape index: {}]
  %s6 = sld [smem:[#allocation0]]
  $region30: #{tpu_custom_call.1} parent=0
    _
  %s8 = ssub.s32 1, %s6
  %s9 = scalar_select 0, %s8, %s6
  $region1: #{tpu_custom_call.1} parent=0
    #allocation2 [shape = 'u8[4096]{0}', space=vmem, size = 0x1000, scoped, tag = 'output window, operand 0, single buffered']
    #allocation3 [shape = 's32[1]{0}', space=sflag, size = 0x4, scoped, tag = 'scoped memory for tpu_custom_call.1']
    %10 = vsyncpa [#allocation3], 0
    // Predicated region
    $region2: #{tpu_custom_call.1} parent=1 // pred_check
      _
    $region3: #{tpu_custom_call.1} parent=1 // pred_check_branch
      %12 = sbr.rel (0) target = $region5
    $region4: #{tpu_custom_call.1} parent=1 // pred_region
      _
    $region5: #{tpu_custom_call.1} parent=1 // pred_fallthru
      _
    // Predicated region
    $region6: #{tpu_custom_call.1} parent=1 // pred_check
      _
    $region7: #{tpu_custom_call.1} parent=1 // pred_check_branch
      %14 = sbr.rel (0) target = $region9
    $region8: #{tpu_custom_call.1} parent=1 // pred_region
      _
    $region9: #{tpu_custom_call.1} parent=1 // pred_fallthru
      _
    // Predicated region
    $region10: #{tpu_custom_call.1} parent=1 // pred_check
      _
    $region11: #{tpu_custom_call.1} parent=1 // pred_check_branch
      %16 = sbr.rel (0) target = $region13
    $region12: #{tpu_custom_call.1} parent=1 // pred_region
      _
    $region13: #{tpu_custom_call.1} parent=1 // pred_fallthru
      _
    // Predicated region
    $region14: #{tpu_custom_call.1} parent=1 // pred_check
      _
    $region15: #{tpu_custom_call.1} parent=1 // pred_check_branch
      %18 = sbr.rel (0) target = $region17
    $region16: #{tpu_custom_call.1} parent=1 // pred_region
      _
    $region17: #{tpu_custom_call.1} parent=1 // pred_fallthru
      _
    // Predicated region
    $region18: #{tpu_custom_call.1} parent=1 // pred_check
      _
    $region19: #{tpu_custom_call.1} parent=1 // pred_check_branch
      %20 = sbr.rel (0) target = $region21
    $region20: #{tpu_custom_call.1} parent=1 // pred_region
      _
    $region21: #{tpu_custom_call.1} parent=1 // pred_fallthru
      _
    %v21 = vld [vmem:[%s0] sm:$0xff]
    %v22 = vld [vmem:[%s0 + $0x8] sm:$0xff]
    %v23 = vld [vmem:[%s0 + $0x10] sm:$0xff]
    %v24 = vld [vmem:[%s0 + $0x18] sm:$0xff]
    %v25 = vld [vmem:[%s0 + $0x20] sm:$0xff]
    %v26 = vld [vmem:[%s0 + $0x28] sm:$0xff]
    %v27 = vld [vmem:[%s0 + $0x30] sm:$0xff]
    %v28 = vld [vmem:[%s0 + $0x38] sm:$0xff]
    %v29 = vld [vmem:[%s1] sm:$0xff]
    %v30 = vld [vmem:[%s1 + $0x8] sm:$0xff]
    %v31 = vld [vmem:[%s2] sm:$0x1]
    %v33 = vlaneseq
    %v34 = vshrl.u32 %v33, 7
    %v35 = vsub.s32 0, %v34
    %v36 = vrot.slane %v31, %v35
    %vm38 = vcmask 130048
    %v40 = vsel %vm38, %v21, 0
    %v43 = vsel %vm38, %v22, 0
    %v46 = vsel %vm38, %v23, 0
    %v49 = vsel %vm38, %v24, 0
    %v52 = vsel %vm38, %v25, 0
    %v55 = vsel %vm38, %v26, 0
    %v58 = vsel %vm38, %v27, 0
    %v61 = vsel %vm38, %v28, 0
    %63 = vmatprep.subr.mxu0 0.0
    %64 = vmatpush1.msra.mxu0 0.0
    %65 = vmatprep.subr.mxu0 0.0
    %66 = vmatpush1.msra.mxu0 0.0
    %67 = vmatprep.subr.mxu0 0.0
    %68 = vmatpush1.msra.mxu0 0.0
    %69 = vmatprep.subr.mxu0 0.0
    %70 = vmatpush1.msra.mxu0 0.0
    %71 = vmatprep.subr.mxu0 0.0
    %72 = vmatpush1.msra.mxu0 0.0
    %73 = vmatprep.subr.mxu0 0.0
    %74 = vmatpush1.msra.mxu0 0.0
    %75 = vmatprep.subr.mxu0 0.0
    %76 = vmatpush1.msra.mxu0 0.0
    %77 = vmatprep.subr.mxu0 0.0
    %78 = vmatpush1.msra.mxu0 0.0
    %79 = vmatprep.subr.mxu0 0.0
    %80 = vmatpush1.msra.mxu0 0.0
    %81 = vmatprep.subr.mxu0 0.0
    %82 = vmatpush1.msra.mxu0 0.0
    %83 = vmatprep.subr.mxu0 0.0
    %84 = vmatpush1.msra.mxu0 0.0
    %85 = vmatprep.subr.mxu0 0.0
    %86 = vmatpush1.msra.mxu0 0.0
    %87 = vmatprep.subr.mxu0 0.0
    %88 = vmatpush1.msra.mxu0 0.0
    %89 = vmatprep.subr.mxu0 0.0
    %90 = vmatpush1.msra.mxu0 0.0
    %91 = vmatprep.subr.mxu0 0.0
    %92 = vmatpush1.msra.mxu0 %v30
    %93 = vmatprep.subr.mxu0 0.0
    %94 = vmatpush1.msra.mxu0 %v29
    %95 = vmatprep.subr.mxu0 0.0
    %96 = vmatpush2.msra.mxu0 0.0
    %97 = vmatprep.subr.mxu0 0.0
    %98 = vmatpush2.msra.mxu0 0.0
    %99 = vmatprep.subr.mxu0 0.0
    %100 = vmatpush2.msra.mxu0 0.0
    %101 = vmatprep.subr.mxu0 0.0
    %102 = vmatpush2.msra.mxu0 0.0
    %103 = vmatprep.subr.mxu0 0.0
    %104 = vmatpush2.msra.mxu0 0.0
    %105 = vmatprep.subr.mxu0 0.0
    %106 = vmatpush2.msra.mxu0 0.0
    %107 = vmatprep.subr.mxu0 0.0
    %108 = vmatpush2.msra.mxu0 0.0
    %109 = vmatprep.subr.mxu0 0.0
    %110 = vmatpush2.msra.mxu0 0.0
    %111 = vmatprep.subr.mxu0 0.0
    %112 = vmatpush2.msra.mxu0 0.0
    %113 = vmatprep.subr.mxu0 0.0
    %114 = vmatpush2.msra.mxu0 0.0
    %115 = vmatprep.subr.mxu0 0.0
    %116 = vmatpush2.msra.mxu0 0.0
    %117 = vmatprep.subr.mxu0 0.0
    %118 = vmatpush2.msra.mxu0 0.0
    %119 = vmatprep.subr.mxu0 0.0
    %120 = vmatpush2.msra.mxu0 0.0
    %121 = vmatprep.subr.mxu0 0.0
    %122 = vmatpush2.msra.mxu0 0.0
    %123 = vmatprep.subr.mxu0 0.0
    %124 = vmatpush2.msra.mxu0 0.0
    %125 = vmatprep.subr.mxu0 0.0
    %126 = vmatpush2.msra.mxu0 0.0
    %127 = vmatprep.mubr.f32.mxu0 0.0
    %128 = vmatmul.mubr.f32.gmra.mxu0 %v40
    %v129 = vpop.f32.mrf.mxu0
    %v130 = vadd.f32 %v36, %v129
    %v131 = vpop.f32.mrf.mxu0
    %132 = vmatprep.mubr.f32.mxu0 0.0
    %133 = vmatmul.mubr.f32.gmra.mxu0 %v43
    %v134 = vpop.f32.mrf.mxu0
    %v135 = vadd.f32 %v36, %v134
    %v136 = vpop.f32.mrf.mxu0
    %137 = vmatprep.mubr.f32.mxu0 0.0
    %138 = vmatmul.mubr.f32.gmra.mxu0 %v46
    %v139 = vpop.f32.mrf.mxu0
    %v140 = vadd.f32 %v36, %v139
    %v141 = vpop.f32.mrf.mxu0
    %142 = vmatprep.mubr.f32.mxu0 0.0
    %143 = vmatmul.mubr.f32.gmra.mxu0 %v49
    %v144 = vpop.f32.mrf.mxu0
    %v145 = vadd.f32 %v36, %v144
    %v146 = vpop.f32.mrf.mxu0
    %147 = vmatprep.mubr.f32.mxu0 0.0
    %148 = vmatmul.mubr.f32.gmra.mxu0 %v52
    %v149 = vpop.f32.mrf.mxu0
    %v150 = vadd.f32 %v36, %v149
    %v151 = vpop.f32.mrf.mxu0
    %152 = vmatprep.mubr.f32.mxu0 0.0
    %153 = vmatmul.mubr.f32.gmra.mxu0 %v55
    %v154 = vpop.f32.mrf.mxu0
    %v155 = vadd.f32 %v36, %v154
    %v156 = vpop.f32.mrf.mxu0
    %157 = vmatprep.mubr.f32.mxu0 0.0
    %158 = vmatmul.mubr.f32.gmra.mxu0 %v58
    %v159 = vpop.f32.mrf.mxu0
    %v160 = vadd.f32 %v36, %v159
    %v161 = vpop.f32.mrf.mxu0
    %162 = vmatprep.mubr.f32.mxu0 0.0
    %163 = vmatmul.mubr.f32.gmra.mxu0 %v61
    %v164 = vpop.f32.mrf.mxu0
    %v165 = vadd.f32 %v36, %v164
    %v166 = vpop.f32.mrf.mxu0
    %167 = vdwg.mxu0
    %v168 = vxor.u32 %v130, 2147483648
    %v169 = vxor.u32 %v135, 2147483648
    %v170 = vxor.u32 %v140, 2147483648
    %v171 = vxor.u32 %v145, 2147483648
    %v172 = vxor.u32 %v150, 2147483648
    %v173 = vxor.u32 %v155, 2147483648
    %v174 = vxor.u32 %v160, 2147483648
    %v175 = vxor.u32 %v165, 2147483648
    %v176 = vmul.f32 %v168, 1.442695
    %v177 = vpow.pop %v176
    %v178 = vmul.f32 %v169, 1.442695
    %v179 = vpow.pop %v178
    %v180 = vmul.f32 %v170, 1.442695
    %v181 = vpow.pop %v180
    %v182 = vmul.f32 %v171, 1.442695
    %v183 = vpow.pop %v182
    %v184 = vmul.f32 %v172, 1.442695
    %v185 = vpow.pop %v184
    %v186 = vmul.f32 %v173, 1.442695
    %v187 = vpow.pop %v186
    %v188 = vmul.f32 %v174, 1.442695
    %v189 = vpow.pop %v188
    %v190 = vmul.f32 %v175, 1.442695
    %v191 = vpow.pop %v190
    %v192 = vadd.f32 %v177, 1.0
    %v193 = vadd.f32 %v179, 1.0
    %v194 = vadd.f32 %v181, 1.0
    %v195 = vadd.f32 %v183, 1.0
    %v196 = vadd.f32 %v185, 1.0
    %v197 = vadd.f32 %v187, 1.0
    %v198 = vadd.f32 %v189, 1.0
    %v199 = vadd.f32 %v191, 1.0
    %v200 = vrcp.pop %v192
    %v201 = vmul.f32 1.0, %v200
    %v202 = vrcp.pop %v193
    %v203 = vmul.f32 1.0, %v202
    %v204 = vrcp.pop %v194
    %v205 = vmul.f32 1.0, %v204
    %v206 = vrcp.pop %v195
    %v207 = vmul.f32 1.0, %v206
    %v208 = vrcp.pop %v196
    %v209 = vmul.f32 1.0, %v208
    %v210 = vrcp.pop %v197
    %v211 = vmul.f32 1.0, %v210
    %v212 = vrcp.pop %v198
    %v213 = vmul.f32 1.0, %v212
    %v214 = vrcp.pop %v199
    %v215 = vmul.f32 1.0, %v214
    %v216 = vtanh.pop %v130
    %v217 = vtanh.pop %v135
    %v218 = vtanh.pop %v140
    %v219 = vtanh.pop %v145
    %v220 = vtanh.pop %v150
    %v221 = vtanh.pop %v155
    %v222 = vtanh.pop %v160
    %v223 = vtanh.pop %v165
    %232 = vrot.lane.b32.xlu0 %v216, 64
    %v233 = vpop.permute.xlu0 %232
    %234 = vrot.lane.b32.xlu0 %v217, 64
    %v235 = vpop.permute.xlu0 %234
    %236 = vrot.lane.b32.xlu0 %v218, 64
    %v237 = vpop.permute.xlu0 %236
    %238 = vrot.lane.b32.xlu0 %v219, 64
    %v239 = vpop.permute.xlu0 %238
    %240 = vrot.lane.b32.xlu0 %v220, 64
    %v241 = vpop.permute.xlu0 %240
    %242 = vrot.lane.b32.xlu0 %v221, 64
    %v243 = vpop.permute.xlu0 %242
    %244 = vrot.lane.b32.xlu0 %v222, 64
    %v245 = vpop.permute.xlu0 %244
    %246 = vrot.lane.b32.xlu0 %v223, 64
    %v247 = vpop.permute.xlu0 %246
    %v256 = vmul.f32 %v201, %v233
    %v257 = vmul.f32 %v203, %v235
    %v258 = vmul.f32 %v205, %v237
    %v259 = vmul.f32 %v207, %v239
    %v260 = vmul.f32 %v209, %v241
    %v261 = vmul.f32 %v211, %v243
    %v262 = vmul.f32 %v213, %v245
    %v263 = vmul.f32 %v215, %v247
    %v264 = vmul.f32 %v201, 0.0
    %266 = vrot.lane.b32.xlu0 %v256, 32
    %v267 = vpop.permute.xlu0 %266
    %v269 = vadd.f32 %v264, %v267
    %v270 = vmul.f32 %v203, %v269
    %272 = vrot.lane.b32.xlu0 %v257, 32
    %v273 = vpop.permute.xlu0 %272
    %v275 = vadd.f32 %v270, %v273
    %v276 = vmul.f32 %v205, %v275
    %278 = vrot.lane.b32.xlu0 %v258, 32
    %v279 = vpop.permute.xlu0 %278
    %v281 = vadd.f32 %v276, %v279
    %v282 = vmul.f32 %v207, %v281
    %284 = vrot.lane.b32.xlu0 %v259, 32
    %v285 = vpop.permute.xlu0 %284
    %v287 = vadd.f32 %v282, %v285
    %v288 = vmul.f32 %v209, %v287
    %290 = vrot.lane.b32.xlu0 %v260, 32
    %v291 = vpop.permute.xlu0 %290
    %v293 = vadd.f32 %v288, %v291
    %v294 = vmul.f32 %v211, %v293
    %296 = vrot.lane.b32.xlu0 %v261, 32
    %v297 = vpop.permute.xlu0 %296
    %v299 = vadd.f32 %v294, %v297
    %v300 = vmul.f32 %v213, %v299
    %302 = vrot.lane.b32.xlu0 %v262, 32
    %v303 = vpop.permute.xlu0 %302
    %v305 = vadd.f32 %v300, %v303
    %v306 = vmul.f32 %v215, %v305
    %308 = vrot.lane.b32.xlu0 %v263, 32
    %v309 = vpop.permute.xlu0 %308
    %v311 = vadd.f32 %v306, %v309
    %v312 = vtanh.pop %v311
    %314 = vrot.lane.b32.xlu0 %v312, 64
    %v315 = vpop.permute.xlu0 %314
    %v317 = vmul.f32 %v215, %v315
    %v318 = vld [vmem:[%s3] sm:$0xff]
    %v319 = vld [vmem:[%s3 + $0x8] sm:$0xff]
    %v320 = vld [vmem:[%s3 + $0x10] sm:$0xff]
    %v321 = vld [vmem:[%s3 + $0x18] sm:$0xff]
    %v322 = vld [vmem:[%s4] sm:$0x1]
    %v324 = vlaneseq
    %v325 = vshrl.u32 %v324, 7
    %v326 = vsub.s32 0, %v325
    %v327 = vrot.slane %v322, %v326
    %330 = vrot.lane.b32.xlu0 %v317, 32
    %v331 = vpop.permute.xlu0 %330
    %vm332 = vcmask 261120
    %v333 = vsel %vm332, %v331, 0
    %335 = vmatprep.subr.mxu0 0.0
    %336 = vmatpush1.msra.mxu0 0.0
    %337 = vmatprep.subr.mxu0 0.0
    %338 = vmatpush1.msra.mxu0 0.0
    %339 = vmatprep.subr.mxu0 0.0
    %340 = vmatpush1.msra.mxu0 0.0
    %341 = vmatprep.subr.mxu0 0.0
    %342 = vmatpush1.msra.mxu0 0.0
    %343 = vmatprep.subr.mxu0 0.0
    %344 = vmatpush1.msra.mxu0 0.0
    %345 = vmatprep.subr.mxu0 0.0
    %346 = vmatpush1.msra.mxu0 0.0
    %347 = vmatprep.subr.mxu0 0.0
    %348 = vmatpush1.msra.mxu0 0.0
    %349 = vmatprep.subr.mxu0 0.0
    %350 = vmatpush1.msra.mxu0 0.0
    %351 = vmatprep.subr.mxu0 0.0
    %352 = vmatpush1.msra.mxu0 0.0
    %353 = vmatprep.subr.mxu0 0.0
    %354 = vmatpush1.msra.mxu0 0.0
    %355 = vmatprep.subr.mxu0 0.0
    %356 = vmatpush1.msra.mxu0 0.0
    %357 = vmatprep.subr.mxu0 0.0
    %358 = vmatpush1.msra.mxu0 0.0
    %359 = vmatprep.subr.mxu0 0.0
    %360 = vmatpush1.msra.mxu0 %v321
    %361 = vmatprep.subr.mxu0 0.0
    %362 = vmatpush1.msra.mxu0 %v320
    %363 = vmatprep.subr.mxu0 0.0
    %364 = vmatpush1.msra.mxu0 %v319
    %365 = vmatprep.subr.mxu0 0.0
    %366 = vmatpush1.msra.mxu0 %v318
    %367 = vmatprep.subr.mxu0 0.0
    %368 = vmatpush2.msra.mxu0 0.0
    %369 = vmatprep.subr.mxu0 0.0
    %370 = vmatpush2.msra.mxu0 0.0
    %371 = vmatprep.subr.mxu0 0.0
    %372 = vmatpush2.msra.mxu0 0.0
    %373 = vmatprep.subr.mxu0 0.0
    %374 = vmatpush2.msra.mxu0 0.0
    %375 = vmatprep.subr.mxu0 0.0
    %376 = vmatpush2.msra.mxu0 0.0
    %377 = vmatprep.subr.mxu0 0.0
    %378 = vmatpush2.msra.mxu0 0.0
    %379 = vmatprep.subr.mxu0 0.0
    %380 = vmatpush2.msra.mxu0 0.0
    %381 = vmatprep.subr.mxu0 0.0
    %382 = vmatpush2.msra.mxu0 0.0
    %383 = vmatprep.subr.mxu0 0.0
    %384 = vmatpush2.msra.mxu0 0.0
    %385 = vmatprep.subr.mxu0 0.0
    %386 = vmatpush2.msra.mxu0 0.0
    %387 = vmatprep.subr.mxu0 0.0
    %388 = vmatpush2.msra.mxu0 0.0
    %389 = vmatprep.subr.mxu0 0.0
    %390 = vmatpush2.msra.mxu0 0.0
    %391 = vmatprep.subr.mxu0 0.0
    %392 = vmatpush2.msra.mxu0 0.0
    %393 = vmatprep.subr.mxu0 0.0
    %394 = vmatpush2.msra.mxu0 0.0
    %395 = vmatprep.subr.mxu0 0.0
    %396 = vmatpush2.msra.mxu0 0.0
    %397 = vmatprep.subr.mxu0 0.0
    %398 = vmatpush2.msra.mxu0 0.0
    %399 = vmatprep.mubr.f32.mxu0 0.0
    %400 = vmatmul.mubr.f32.gmra.mxu0 %v333
    %v401 = vpop.f32.mrf.mxu0
    %v402 = vadd.f32 %v327, %v401
    %v403 = vpop.f32.mrf.mxu0
    %404 = vdwg.mxu0
    %405 = vst [vmem:[#allocation2] sm:$0xff] %v402
    // Predicated region
    $region22: #{tpu_custom_call.1} parent=1 // pred_check
      _
    $region23: #{tpu_custom_call.1} parent=1 // pred_check_branch
      %407 = sbr.rel (0) target = $region25
    $region24: #{tpu_custom_call.1} parent=1 // pred_region
      %s409 = ssub.s32 128, 128
      %410 = vsyncadd [#allocation3], %s409
      %s412 = sshll.u32 [#allocation2], 4
      %s413 = int_to_ptr.vmem [resolvable:$true] %s412
      %415 = dma.vmem_to_hbm [thread:$0]  %s413, 128, %s5, [#allocation3]
    $region25: #{tpu_custom_call.1} parent=1 // pred_fallthru
      _
    // Predicated region
    $region26: #{tpu_custom_call.1} parent=1 // pred_check
      _
    $region27: #{tpu_custom_call.1} parent=1 // pred_check_branch
      %417 = sbr.rel (0) target = $region29
    $region28: #{tpu_custom_call.1} parent=1 // pred_region
      %418 = dma.done [#allocation3], 128
    $region29: #{tpu_custom_call.1} parent=1 // pred_fallthru
      _
    %419 = vsyncpa [#allocation3], 1

</llo_original>
